<compile_context>
chip_gen: v7x
topology: tpu7x:2x2x1
jax: 0.10.0
libtpu: 0.0.40
codegen_flags: <defaults>
</compile_context>

<pallas_src>
import math

import jax
import jax.numpy as jnp
from jax.experimental import pallas as pl
from jax.experimental.pallas import tpu as pltpu


def affine_constant_flow_kernel(x_ref, s_ref, t_ref, z_ref):
    # x_ref/z_ref: (TB, lane) streamed tiles; s_ref/t_ref: (1, lane) resident.
    z_ref[...] = x_ref[...] * jnp.exp(s_ref[...]) + t_ref[...]


def _sublane_multiple(dtype):
    # Min-tile second-minor dim: f32 -> 8, bf16/f16 -> 16, int8/fp8 -> 32.
    return max(8, 32 // jnp.dtype(dtype).itemsize)


def _device_budget():
    """Per-generation (per_buffer_bytes, min_grid_steps)."""
    kind = ""
    try:
        kind = jax.devices()[0].device_kind.lower()
    except Exception:
        pass
    MiB = 1024 * 1024
    if "v7" in kind:
        # 64 MiB VMEM per TC: 4 x 8 MiB buffers + headroom; 2 TCs -> want >=2 steps.
        return 8 * MiB, 2
    if "v6" in kind:
        # 128 MiB physical; 4 x 8 MiB = 32 MiB total footprint.
        return 8 * MiB, 1
    if "v5" in kind:
        # Smaller scoped-VMEM comfort zone: 4 x 3 MiB = 12 MiB total.
        return 3 * MiB, 1
    # Unknown chip: conservative buffers, assume possibly multi-core.
    return 4 * MiB, 2


def _pick_batch_tile(rows, lane, itemsize, per_buffer_bytes, sublane_mult,
                     min_grid_steps):
    """Largest batch tile (multiple of the dtype sublane) within the VMEM budget."""
    row_bytes = lane * itemsize
    max_rows = max(
        sublane_mult,
        (per_buffer_bytes // max(row_bytes, 1)) // sublane_mult * sublane_mult,
    )
    if rows > max_rows:
        return max_rows
    # Whole input fits in one tile.
    if min_grid_steps >= 2 and rows >= 2 * sublane_mult:
        # Split evenly so both TensorCores (v7x megacore) get a block.
        half = -(-rows // 2)
        tb = -(-half // sublane_mult) * sublane_mult
        return min(tb, rows)
    return rows  # single full-extent block (satisfies the (8,128) rule)


def affine_constant_flow(x, s, t):
    """Forward pass of AffineConstantFlow.

    Args:
      x: (B, dim) float32
      s: (1, dim) float32  (learned log-scale)
      t: (1, dim) float32  (learned shift)
    Returns:
      z: (B, dim) float32
      log_det: (1,) float32  (== torch.sum(s, dim=1) for s of shape (1, dim))
    """
    B, dim = x.shape
    itemsize = jnp.dtype(x.dtype).itemsize

    # log_det only depends on s -> plain JAX in the wrapper (keeps the kernel a
    # pure map so the batch grid axis can be "parallel").
    log_det = jnp.sum(s, axis=1)  # (1,)

    # Lane-dense fold: pack k batch rows into the lane axis so the last dim is
    # a multiple of 128 (unmasked stores, wide DMAs). k = 128 / gcd(dim, 128).
    k = 128 // math.gcd(dim, 128)
    if k > 1:
        B_pad = -(-B // k) * k
        x_f = x if B_pad == B else jnp.pad(x, ((0, B_pad - B), (0, 0)))
        x_f = x_f.reshape(B_pad // k, k * dim)
        s_f = jnp.tile(s, (1, k))
        t_f = jnp.tile(t, (1, k))
    else:
        B_pad = B
        x_f, s_f, t_f = x, s, t
    rows, lane = x_f.shape

    sub = _sublane_multiple(x.dtype)
    per_buf, min_steps = _device_budget()
    tb = _pick_batch_tile(rows, lane, itemsize, per_buf, sub, min_steps)
    grid = (pl.cdiv(rows, tb),)

    # Explicit VMEM budget: 2 streamed arrays (x in, z out) x 2 pipeline
    # buffers x tile + resident s/t + headroom for compiler scratch.
    tile_bytes = tb * lane * itemsize
    vmem_limit = int(max(4 * tile_bytes + 4 * lane * itemsize + (4 << 20), 32 << 20))

    z_f = pl.pallas_call(
        affine_constant_flow_kernel,
        out_shape=jax.ShapeDtypeStruct((rows, lane), x.dtype),
        grid=grid,
        in_specs=[
            pl.BlockSpec((tb, lane), lambda i: (i, 0)),   # x: streamed over batch
            pl.BlockSpec((1, lane), lambda i: (0, 0)),    # s: resident
            pl.BlockSpec((1, lane), lambda i: (0, 0)),    # t: resident
        ],
        out_specs=pl.BlockSpec((tb, lane), lambda i: (i, 0)),
        compiler_params=pltpu.CompilerParams(
            dimension_semantics=("parallel",),
            vmem_limit_bytes=vmem_limit,
        ),
        cost_estimate=pl.CostEstimate(
            flops=2 * rows * lane,
            transcendentals=lane * grid[0],
            bytes_accessed=2 * rows * lane * itemsize + 2 * lane * itemsize,
        ),
    )(x_f, s_f, t_f)

    if k > 1:
        z = z_f.reshape(B_pad, dim)
        if B_pad != B:
            z = z[:B]
    else:
        z = z_f
    return z, log_det


if __name__ == "__main__":
    key = jax.random.PRNGKey(0)
    k_x, k_s, k_t, k_x2, k_x3, k_s3, k_t3 = jax.random.split(key, 7)

    # Small shapes consistent with the module: (B, dim) flow input.
    B, dim = 8, 32
    x = jax.random.normal(k_x, (B, dim), dtype=jnp.float32)
    # Deterministic "learned" parameters (torch.randn(1, dim) equivalents).
    s = jax.random.normal(k_s, (1, dim), dtype=jnp.float32)
    t = jax.random.normal(k_t, (1, dim), dtype=jnp.float32)

    z, log_det = affine_constant_flow(x, s, t)
    jax.block_until_ready((z, log_det))
    assert z.shape == (B, dim) and log_det.shape == (1,)
    assert jnp.allclose(z, x * jnp.exp(s) + t, atol=1e-5, rtol=1e-5)
    assert jnp.allclose(log_det, jnp.sum(s, axis=1), atol=1e-5, rtol=1e-5)

    # Batch not a multiple of the fold factor (k = 128//gcd(32,128) = 4)
    # -> exercises the pad-and-slice path.
    B2 = 2
    x2 = jax.random.normal(k_x2, (B2, dim), dtype=jnp.float32)
    z2, log_det2 = affine_constant_flow(x2, s, t)
    jax.block_until_ready((z2, log_det2))
    assert z2.shape == (B2, dim)
    assert jnp.allclose(z2, x2 * jnp.exp(s) + t, atol=1e-5, rtol=1e-5)
    assert jnp.allclose(log_det2, jnp.sum(s, axis=1), atol=1e-5, rtol=1e-5)

    # dim that does not divide 128 (48 -> k=8, lane=384): generalized gcd fold.
    B3, dim3 = 8, 48
    x3 = jax.random.normal(k_x3, (B3, dim3), dtype=jnp.float32)
    s3 = jax.random.normal(k_s3, (1, dim3), dtype=jnp.float32)
    t3 = jax.random.normal(k_t3, (1, dim3), dtype=jnp.float32)
    z3, log_det3 = affine_constant_flow(x3, s3, t3)
    jax.block_until_ready((z3, log_det3))
    assert z3.shape == (B3, dim3)
    assert jnp.allclose(z3, x3 * jnp.exp(s3) + t3, atol=1e-5, rtol=1e-5)
    assert jnp.allclose(log_det3, jnp.sum(s3, axis=1), atol=1e-5, rtol=1e-5)

    print("KERNEL_OK")
</pallas_src>

<mosaic_0001>
module attributes {stable_mosaic.version = 11 : i64} {
  func.func @affine_constant_flow_kernel(%arg0: i32, %arg1: memref<2x128xf32, #tpu.memory_space<vmem>>, %arg2: memref<1x128xf32, #tpu.memory_space<vmem>>, %arg3: memref<1x128xf32, #tpu.memory_space<vmem>>, %arg4: memref<2x128xf32, #tpu.memory_space<vmem>>) attributes {dimension_semantics = [#tpu.dimension_semantics<parallel>], iteration_bounds = array<i64: 1>, scalar_prefetch = 0 : i64, scratch_operands = 0 : i64, tpu.core_type = #tpu.core_type<tc>, window_params = [{transform_indices = @transform_0, window_bounds = array<i64: 2, 128>}, {pipeline_mode = #tpu.pipeline_mode<synchronous>, transform_indices = @transform_1, window_bounds = array<i64: 1, 128>}, {pipeline_mode = #tpu.pipeline_mode<synchronous>, transform_indices = @transform_2, window_bounds = array<i64: 1, 128>}, {transform_indices = @transform_3, window_bounds = array<i64: 2, 128>}]} {
    %c0 = arith.constant 0 : index
    %c0_0 = arith.constant 0 : index
    %0 = vector.load %arg1[%c0, %c0_0] : memref<2x128xf32, #tpu.memory_space<vmem>>, vector<2x128xf32>
    %c0_1 = arith.constant 0 : index
    %c0_2 = arith.constant 0 : index
    %1 = vector.load %arg2[%c0_1, %c0_2] : memref<1x128xf32, #tpu.memory_space<vmem>>, vector<1x128xf32>
    %2 = math.exp %1 : vector<1x128xf32>
    %3 = vector.broadcast %2 : vector<1x128xf32> to vector<2x128xf32>
    %4 = arith.mulf %0, %3 : vector<2x128xf32>
    %c0_3 = arith.constant 0 : index
    %c0_4 = arith.constant 0 : index
    %5 = vector.load %arg3[%c0_3, %c0_4] : memref<1x128xf32, #tpu.memory_space<vmem>>, vector<1x128xf32>
    %6 = vector.broadcast %5 : vector<1x128xf32> to vector<2x128xf32>
    %7 = arith.addf %4, %6 : vector<2x128xf32>
    %c0_5 = arith.constant 0 : index
    %c0_6 = arith.constant 0 : index
    %8 = vector.load %arg4[%c0_5, %c0_6] : memref<2x128xf32, #tpu.memory_space<vmem>>, vector<2x128xf32>
    tpu.vector_store %arg4[%c0_5, %c0_6], %7 {strides = array<i32>} : memref<2x128xf32, #tpu.memory_space<vmem>>, vector<2x128xf32>,
    return
  }
  func.func @transform_0(%arg0: i32) -> (i32, i32) {
    %c0_i32 = arith.constant 0 : i32
    %c0_i32_0 = arith.constant 0 : i32
    return %arg0, %c0_i32 : i32, i32
  }
  func.func @transform_1(%arg0: i32) -> (i32, i32) {
    %c0_i32 = arith.constant 0 : i32
    %c0_i32_0 = arith.constant 0 : i32
    %c0_i32_1 = arith.constant 0 : i32
    return %c0_i32, %c0_i32_0 : i32, i32
  }
  func.func @transform_2(%arg0: i32) -> (i32, i32) {
    %c0_i32 = arith.constant 0 : i32
    %c0_i32_0 = arith.constant 0 : i32
    %c0_i32_1 = arith.constant 0 : i32
    return %c0_i32, %c0_i32_0 : i32, i32
  }
  func.func @transform_3(%arg0: i32) -> (i32, i32) {
    %c0_i32 = arith.constant 0 : i32
    %c0_i32_0 = arith.constant 0 : i32
    return %arg0, %c0_i32 : i32, i32
  }
}

</mosaic_0001>

<llo_original>
// kernel: tpu_custom_call.1
$region0: #{tpu_custom_call.1}
  #allocation0 [shape = 'u32[]', space=smem, size = 0x4, offset = 0x4, fixed_abs, tag = 'smem constant byte address 0x4 - core index']
  #allocation1 [shape = 'u32[144,128]{1,0:T(1,128)}', space=vmem, size = 0x12000, scoped, tag = 'internal scratch']
  %s0 = inlined_call_operand.hbm [shape: f32[2,128], index: 0, kind: input, shape index: {}]
  %s1 = inlined_call_operand.vmem [shape: f32[1,128], index: 1, kind: input, shape index: {}]
  %s2 = inlined_call_operand.vmem [shape: f32[1,128], index: 2, kind: input, shape index: {}]
  %s3 = inlined_call_operand.hbm [shape: f32[2,128], index: 3, kind: output, shape index: {}]
  %s4 = sld [smem:[#allocation0]]
  $region26: #{tpu_custom_call.1} parent=0
    _
  %s6 = ssub.s32 1, %s4
  %s7 = scalar_select 0, %s6, %s4
  $region1: #{tpu_custom_call.1} parent=0
    #allocation2 [shape = 'u8[1024]{0}', space=vmem, size = 0x400, scoped, tag = 'input window, operand 0, single buffered']
    #allocation3 [shape = 's32[1]{0}', space=sflag, size = 0x4, scoped, tag = 'scoped memory for tpu_custom_call.1']
    #allocation4 [shape = 's32[1]{0}', space=sflag, size = 0x4, scoped, tag = 'scoped memory for tpu_custom_call.1']
    #allocation5 [shape = 'u8[1024]{0}', space=vmem, size = 0x400, scoped, tag = 'output window, operand 0, single buffered']
    %8 = vsyncpa [#allocation3], 0
    %9 = vsyncpa [#allocation4], 0
    // Predicated region
    $region2: #{tpu_custom_call.1} parent=1 // pred_check
      _
    $region3: #{tpu_custom_call.1} parent=1 // pred_check_branch
      %11 = sbr.rel (0) target = $region5
    $region4: #{tpu_custom_call.1} parent=1 // pred_region
      %s13 = ssub.s32 32, 32
      %14 = vsyncadd [#allocation3], %s13
      %s16 = sshll.u32 [#allocation2], 4
      %s17 = int_to_ptr.vmem [resolvable:$true] %s16
      %19 = dma.hbm_to_vmem [thread:$0]  %s0, 32, %s17, [#allocation3]
    $region5: #{tpu_custom_call.1} parent=1 // pred_fallthru
      _
    // Predicated region
    $region6: #{tpu_custom_call.1} parent=1 // pred_check
      _
    $region7: #{tpu_custom_call.1} parent=1 // pred_check_branch
      %21 = sbr.rel (0) target = $region9
    $region8: #{tpu_custom_call.1} parent=1 // pred_region
      _
    $region9: #{tpu_custom_call.1} parent=1 // pred_fallthru
      _
    // Predicated region
    $region10: #{tpu_custom_call.1} parent=1 // pred_check
      _
    $region11: #{tpu_custom_call.1} parent=1 // pred_check_branch
      %23 = sbr.rel (0) target = $region13
    $region12: #{tpu_custom_call.1} parent=1 // pred_region
      _
    $region13: #{tpu_custom_call.1} parent=1 // pred_fallthru
      _
    // Predicated region
    $region14: #{tpu_custom_call.1} parent=1 // pred_check
      _
    $region15: #{tpu_custom_call.1} parent=1 // pred_check_branch
      %25 = sbr.rel (0) target = $region17
    $region16: #{tpu_custom_call.1} parent=1 // pred_region
      %26 = dma.done [#allocation3], 32
    $region17: #{tpu_custom_call.1} parent=1 // pred_fallthru
      _
    %v27 = vld [vmem:[#allocation2] sm:$0x3]
    %v28 = vld [vmem:[%s1] sm:$0x1]
    %v29 = vmul.f32 %v28, 1.442695
    %v30 = vpow.pop %v29
    %v32 = vlaneseq
    %v33 = vshrl.u32 %v32, 7
    %v34 = vsub.s32 0, %v33
    %v35 = vrot.slane %v30, %v34
    %v37 = vmul.f32 %v27, %v35
    %v38 = vld [vmem:[%s2] sm:$0x1]
    %v40 = vlaneseq
    %v41 = vshrl.u32 %v40, 7
    %v42 = vsub.s32 0, %v41
    %v43 = vrot.slane %v38, %v42
    %v45 = vadd.f32 %v37, %v43
    %46 = vst [vmem:[#allocation5] sm:$0x3] %v45
    // Predicated region
    $region18: #{tpu_custom_call.1} parent=1 // pred_check
      _
    $region19: #{tpu_custom_call.1} parent=1 // pred_check_branch
      %48 = sbr.rel (0) target = $region21
    $region20: #{tpu_custom_call.1} parent=1 // pred_region
      %s50 = ssub.s32 32, 32
      %51 = vsyncadd [#allocation4], %s50
      %s53 = sshll.u32 [#allocation5], 4
      %s54 = int_to_ptr.vmem [resolvable:$true] %s53
      %56 = dma.vmem_to_hbm [thread:$0]  %s54, 32, %s3, [#allocation4]
    $region21: #{tpu_custom_call.1} parent=1 // pred_fallthru
      _
    // Predicated region
    $region22: #{tpu_custom_call.1} parent=1 // pred_check
      _
    $region23: #{tpu_custom_call.1} parent=1 // pred_check_branch
      %58 = sbr.rel (0) target = $region25
    $region24: #{tpu_custom_call.1} parent=1 // pred_region
      %59 = dma.done [#allocation4], 32
    $region25: #{tpu_custom_call.1} parent=1 // pred_fallthru
      _
    %60 = vsyncpa [#allocation3], 1
    %61 = vsyncpa [#allocation4], 1

</llo_original>
